<compile_context>
chip_gen: v5e
topology: v5e:2x2
jax: 0.10.0
libtpu: 0.0.40
codegen_flags: <defaults>
</compile_context>

<pallas_src>
import numpy as np
import jax
import jax.numpy as jnp
from jax.experimental import pallas as pl
from jax.experimental.pallas import tpu as pltpu


def _round_up(x, m):
    return (x + m - 1) // m * m


def _pick_row_tile(n, max_tile=1024, min_tile=128):
    """Row tile for the flattened (B*S) axis.

    Prefers a tile that divides n exactly (no padding -> the post-kernel [:n]
    slice is a free reshape) and leaves >= 2 grid steps (v7x has 2 TensorCores
    under dimension_semantics=('parallel',)).  Falls back to padding with a
    large tile when no reasonable divisor exists.  Returns (tile, n_padded).
    """
    if n % 8 == 0:
        lo = 8 if n <= max_tile else min_tile
        cands = [t for t in range(min(max_tile, n), lo - 1, -8) if n % t == 0]
        for t in cands:
            if n // t >= 2:
                return t, n
        if cands:                       # only a single-step divisor available
            return cands[0], n
    t = min(max_tile, max(8, _round_up(-(-n // 2), 8)))
    return t, _round_up(n, t)


# -----------------------------------------------------------------------------
# Kernels
# -----------------------------------------------------------------------------
def _emissions_kernel(x_ref, w1_ref, b1_ref, w2_ref, b2_ref, o_ref):
    """Fused mid_linear + classifier over one row tile.

    x_ref: (tile_rows, H) bf16; o_ref: (tile_rows, T_pad) bf16.  Weights are
    bf16 and resident across the grid (index_map returns (0,0) every step);
    both matmuls accumulate in f32 on the MXU.
    """
    h = jnp.dot(x_ref[...], w1_ref[...], preferred_element_type=jnp.float32)
    h = jnp.maximum(h + b1_ref[...], 0.0)              # ReLU(x@W1 + b1), f32
    # Cast back to bf16 so the second matmul also hits the fast bf16 MXU path.
    e = jnp.dot(h.astype(w2_ref.dtype), w2_ref[...],
                preferred_element_type=jnp.float32)
    o_ref[...] = (e + b2_ref[...]).astype(o_ref.dtype)


def _mixup_kernel(sel_ref,              # scalar-prefetch (drives the index_maps)
                  lam_ref,              # (1,) f32 in SMEM
                  e_ref, e_perm_ref,    # (1, S, T_pad) emissions / gathered
                  mixed_e_ref):
    """mixed_e = lam*e[b] + (1-lam)*e[sel[b]] (lane-dense, f32 math, bf16 store).

    Mixing emissions is mathematically identical to classifying the mixed
    post-ReLU hidden states because the classifier head is affine and
    lam + (1-lam) = 1.  The permuted operand is fetched via the
    scalar-prefetch-driven index_map of its BlockSpec (gather over batch).
    """
    del sel_ref  # consumed only by the index_maps
    lam = lam_ref[0]
    e = e_ref[...].astype(jnp.float32)
    ep = e_perm_ref[...].astype(jnp.float32)
    mixed_e_ref[...] = (lam * e + (1.0 - lam) * ep).astype(mixed_e_ref.dtype)


# -----------------------------------------------------------------------------
# Pallas wrappers
# -----------------------------------------------------------------------------
@jax.jit
def emissions_padded(x, w1, b1, w2_pad, b2_pad):
    """relu(x @ W1 + b1) @ W2_pad + b2_pad, returned as (B, S, T_pad) bf16.

    (B, S) is flattened into one row axis and tiled so every matmul has a big
    sublane-dense LHS; T_pad is a multiple of 128 so output stores are
    lane-dense.  Weights stay resident in VMEM across the grid.
    """
    B, S, H = x.shape
    M = w1.shape[1]
    T_pad = w2_pad.shape[1]

    N = B * S
    tile, N_pad = _pick_row_tile(N)

    xf = x.reshape(N, H).astype(jnp.bfloat16)
    if N_pad != N:
        xf = jnp.pad(xf, ((0, N_pad - N), (0, 0)))

    # VMEM budget: double-buffered x / output tiles + resident bf16 weights
    # + f32 biases, with 2x headroom; clamp to v7x's 64 MiB physical VMEM.
    vmem_need = (2 * tile * H * 2 + 2 * tile * T_pad * 2
                 + 2 * (H * M + M * T_pad) * 2
                 + 2 * (M + T_pad) * 4)
    vmem_limit = min(max(2 * vmem_need, 1 << 20), 64 * 1024 * 1024)

    out = pl.pallas_call(
        _emissions_kernel,
        out_shape=jax.ShapeDtypeStruct((N_pad, T_pad), jnp.bfloat16),
        grid_spec=pltpu.PrefetchScalarGridSpec(
            num_scalar_prefetch=0,
            grid=(N_pad // tile,),
            in_specs=[
                pl.BlockSpec((tile, H), lambda i: (i, 0)),      # x row tile
                pl.BlockSpec((H, M), lambda i: (0, 0)),         # W1 (resident)
                pl.BlockSpec((1, M), lambda i: (0, 0)),         # b1
                pl.BlockSpec((M, T_pad), lambda i: (0, 0)),     # W2 (resident)
                pl.BlockSpec((1, T_pad), lambda i: (0, 0)),     # b2
            ],
            out_specs=pl.BlockSpec((tile, T_pad), lambda i: (i, 0)),
        ),
        compiler_params=pltpu.CompilerParams(
            dimension_semantics=("parallel",),
            vmem_limit_bytes=vmem_limit),
    )(xf, w1, b1, w2_pad, b2_pad)

    if N_pad != N:
        out = out[:N]
    return out.reshape(B, S, T_pad)


@jax.jit
def mixup_emissions(selection, lam_arr, emis_pad):
    """Elementwise mixup of lane-dense emissions; batch gather via scalar prefetch."""
    B, S, T_pad = emis_pad.shape
    return pl.pallas_call(
        _mixup_kernel,
        out_shape=jax.ShapeDtypeStruct((B, S, T_pad), emis_pad.dtype),
        grid_spec=pltpu.PrefetchScalarGridSpec(
            num_scalar_prefetch=1,   # `selection` permutation -> SMEM
            grid=(B,),
            in_specs=[
                pl.BlockSpec(memory_space=pltpu.MemorySpace.SMEM),          # lam
                pl.BlockSpec((1, S, T_pad), lambda b, sel: (b, 0, 0)),      # e[b]
                pl.BlockSpec((1, S, T_pad), lambda b, sel: (sel[b], 0, 0)), # e[sel[b]]
            ],
            out_specs=pl.BlockSpec((1, S, T_pad), lambda b, sel: (b, 0, 0)),
        ),
        compiler_params=pltpu.CompilerParams(
            dimension_semantics=("parallel",)),   # distinct output block per step
    )(selection, lam_arr, emis_pad, emis_pad)


# -----------------------------------------------------------------------------
# Model wrapper (parameter init + forward dispatch, mirroring MixUp_LW_Model)
# -----------------------------------------------------------------------------
class MixUpLWModelPallas:
    def __init__(self, hidden_size, num_tags, mid_linear_dims=128, seed=0):
        k = jax.random.PRNGKey(seed)
        k1, k2 = jax.random.split(k)
        init_range = 0.02  # BERT initializer_range
        self.num_tags = num_tags
        self.w1 = (jax.random.normal(k1, (hidden_size, mid_linear_dims),
                                     jnp.float32) * init_range)
        self.b1 = jnp.zeros((1, mid_linear_dims), jnp.float32)      # zeroed bias
        self.w2 = (jax.random.normal(k2, (mid_linear_dims, num_tags),
                                     jnp.float32) * init_range)
        self.b2 = jnp.zeros((1, num_tags), jnp.float32)             # zeroed bias
        # Lane-dense padded classifier weights (extra columns are zero).
        t_pad = _round_up(num_tags, 128)
        self.t_pad = t_pad
        self.w2_pad = jnp.pad(self.w2, ((0, 0), (0, t_pad - num_tags)))
        self.b2_pad = jnp.pad(self.b2, ((0, 0), (0, t_pad - num_tags)))
        # bf16 copies for the MXU fast path (cast once at init).
        self.w1_bf = self.w1.astype(jnp.bfloat16)
        self.w2_pad_bf = self.w2_pad.astype(jnp.bfloat16)

    def forward(self, hidden_states, attention_masks, labels=None,
                alpha=0.5, beta=0.5, mode="cal_loss", rng=None):
        T = self.num_tags
        # Single fused mid_linear + classifier pass (bf16, padded lane-dense T).
        emis_pad = emissions_padded(hidden_states, self.w1_bf, self.b1,
                                    self.w2_pad_bf, self.b2_pad)    # (B,S,T_pad)

        if mode == "cal_loss":
            # TODO(synk): rng defaults to a fixed seed -> deterministic mixup;
            # pass a fresh np.random.Generator per step for real training.
            rng = np.random.default_rng(0) if rng is None else rng
            lam = float(rng.beta(alpha, beta))
            B = hidden_states.shape[0]
            selection = jnp.asarray(rng.permutation(B), jnp.int32)
            lam_arr = jnp.full((1,), lam, jnp.float32)
            # Mix emissions (== classifier(mixed hidden) since head is affine).
            mixed_e_pad = mixup_emissions(selection, lam_arr, emis_pad)
            # Labels are tiny and lane-sparse (T << 128): mix them in plain XLA.
            mixed_labels = (lam * labels
                            + (1.0 - lam) * jnp.take(labels, selection, axis=0))
            # Single lane-misaligned slice on the returned tensor only.
            mixed_emissions = mixed_e_pad[..., :T]
            # TODO(synk): LWLoss_with_cross(mixed_emissions, mixed_labels, ...)
            return (mixed_emissions, mixed_labels, lam, selection)

        emissions = emis_pad[..., :T]
        if mode == "cal_emissions":
            return (emissions,)

        # decode mode: trim argmax predictions to attention-mask lengths (glue)
        lengths = np.asarray(jnp.sum(attention_masks, axis=1)).tolist()
        tokens_out = np.asarray(jnp.argmax(emissions, axis=-1)).tolist()
        for loc, length in enumerate(lengths):
            tokens_out[loc] = tokens_out[loc][0:int(length)]
        return (tokens_out, emissions)


# -----------------------------------------------------------------------------
# Main
# -----------------------------------------------------------------------------
if __name__ == "__main__":
    B, S, H = 2, 8, 32          # batch, seq, bert hidden_size (small synthetic)
    M, T = 128, 8               # mid_linear_dims (default 128), num_tags

    key = jax.random.PRNGKey(0)
    kx, kl = jax.random.split(key)
    hidden_states = jax.random.normal(kx, (B, S, H), jnp.float32)   # bert_outputs[0]
    attention_masks = jnp.ones((B, S), jnp.int32).at[1, 5:].set(0)
    label_ids = jax.random.randint(kl, (B, S), 0, T)
    labels = jax.nn.one_hot(label_ids, T, dtype=jnp.float32)        # (B, S, T)

    model = MixUpLWModelPallas(hidden_size=H, num_tags=T, mid_linear_dims=M)

    # mode='cal_emissions'
    (emissions,) = model.forward(hidden_states, attention_masks,
                                 mode="cal_emissions")
    jax.block_until_ready(emissions)

    # mode='cal_loss' (mixup path)
    mixed_emissions, mixed_labels, lam, selection = model.forward(
        hidden_states, attention_masks, labels=labels, mode="cal_loss")
    jax.block_until_ready(mixed_emissions)
    jax.block_until_ready(mixed_labels)

    # decode mode
    tokens_out, _ = model.forward(hidden_states, attention_masks, mode="decode")

    # --- reference check in plain JAX (original module semantics, bf16 inputs) ---
    xb = hidden_states.astype(jnp.bfloat16)
    h_ref = jnp.maximum(
        jnp.dot(xb, model.w1_bf, preferred_element_type=jnp.float32) + model.b1,
        0.0)                                                         # (B,S,M) f32
    emis_ref = (jnp.dot(h_ref.astype(jnp.bfloat16), model.w2_pad_bf,
                        preferred_element_type=jnp.float32) + model.b2_pad)[..., :T]
    np.testing.assert_allclose(np.asarray(emissions, np.float32),
                               np.asarray(emis_ref), rtol=2e-2, atol=5e-3)

    sel_np = np.asarray(selection)
    # Module semantics: mix post-ReLU hidden states, THEN classify.
    mix_h_ref = lam * h_ref + (1.0 - lam) * h_ref[sel_np, :]
    mix_emis_ref = (jnp.dot(mix_h_ref.astype(jnp.bfloat16), model.w2_pad_bf,
                            preferred_element_type=jnp.float32)
                    + model.b2_pad)[..., :T]
    mix_lab_ref = lam * labels + (1.0 - lam) * labels[sel_np, :]
    np.testing.assert_allclose(np.asarray(mixed_emissions, np.float32),
                               np.asarray(mix_emis_ref), rtol=5e-2, atol=5e-3)
    np.testing.assert_allclose(np.asarray(mixed_labels),
                               np.asarray(mix_lab_ref), rtol=1e-6, atol=1e-6)

    print("KERNEL_OK")
</pallas_src>

<mosaic_0001>
module attributes {stable_mosaic.version = 11 : i64} {
  func.func @_emissions_kernel(%arg0: i32, %arg1: memref<8x32xbf16, #tpu.memory_space<vmem>>, %arg2: memref<32x128xbf16, #tpu.memory_space<vmem>>, %arg3: memref<1x128xf32, #tpu.memory_space<vmem>>, %arg4: memref<128x128xbf16, #tpu.memory_space<vmem>>, %arg5: memref<1x128xf32, #tpu.memory_space<vmem>>, %arg6: memref<8x128xbf16, #tpu.memory_space<vmem>>) attributes {dimension_semantics = [#tpu.dimension_semantics<parallel>], iteration_bounds = array<i64: 2>, scalar_prefetch = 0 : i64, scratch_operands = 0 : i64, tpu.core_type = #tpu.core_type<tc>, window_params = [{transform_indices = @transform_0, window_bounds = array<i64: 8, 32>}, {pipeline_mode = #tpu.pipeline_mode<synchronous>, transform_indices = @transform_1, window_bounds = array<i64: 32, 128>}, {pipeline_mode = #tpu.pipeline_mode<synchronous>, transform_indices = @transform_2, window_bounds = array<i64: 1, 128>}, {pipeline_mode = #tpu.pipeline_mode<synchronous>, transform_indices = @transform_3, window_bounds = array<i64: 128, 128>}, {pipeline_mode = #tpu.pipeline_mode<synchronous>, transform_indices = @transform_4, window_bounds = array<i64: 1, 128>}, {transform_indices = @transform_5, window_bounds = array<i64: 8, 128>}]} {
    %c0 = arith.constant 0 : index
    %c0_0 = arith.constant 0 : index
    %0 = vector.load %arg1[%c0, %c0_0] : memref<8x32xbf16, #tpu.memory_space<vmem>>, vector<8x32xbf16>
    %c0_1 = arith.constant 0 : index
    %c0_2 = arith.constant 0 : index
    %1 = vector.load %arg2[%c0_1, %c0_2] : memref<32x128xbf16, #tpu.memory_space<vmem>>, vector<32x128xbf16>
    %cst = arith.constant dense<0.000000e+00> : vector<8x128xf32>
    %2 = tpu.matmul %0, %1, %cst {dimension_numbers = #tpu.dot_dimension_numbers<[1], [0], [0], [1], [0, 0, 1, 1], [], []>} : vector<8x32xbf16>, vector<32x128xbf16>, vector<8x128xf32> -> vector<8x128xf32>
    %c0_3 = arith.constant 0 : index
    %c0_4 = arith.constant 0 : index
    %3 = vector.load %arg3[%c0_3, %c0_4] : memref<1x128xf32, #tpu.memory_space<vmem>>, vector<1x128xf32>
    %4 = vector.broadcast %3 : vector<1x128xf32> to vector<8x128xf32>
    %5 = arith.addf %2, %4 : vector<8x128xf32>
    %cst_5 = arith.constant 0.000000e+00 : f32
    %6 = vector.broadcast %cst_5 : f32 to vector<8x128xf32>
    %7 = arith.maximumf %5, %6 : vector<8x128xf32>
    %8 = arith.truncf %7 : vector<8x128xf32> to vector<8x128xbf16>
    %c0_6 = arith.constant 0 : index
    %c0_7 = arith.constant 0 : index
    %9 = vector.load %arg4[%c0_6, %c0_7] : memref<128x128xbf16, #tpu.memory_space<vmem>>, vector<128x128xbf16>
    %cst_8 = arith.constant dense<0.000000e+00> : vector<8x128xf32>
    %10 = tpu.matmul %8, %9, %cst_8 {dimension_numbers = #tpu.dot_dimension_numbers<[1], [0], [0], [1], [0, 0, 1, 1], [], []>} : vector<8x128xbf16>, vector<128x128xbf16>, vector<8x128xf32> -> vector<8x128xf32>
    %c0_9 = arith.constant 0 : index
    %c0_10 = arith.constant 0 : index
    %11 = vector.load %arg5[%c0_9, %c0_10] : memref<1x128xf32, #tpu.memory_space<vmem>>, vector<1x128xf32>
    %12 = vector.broadcast %11 : vector<1x128xf32> to vector<8x128xf32>
    %13 = arith.addf %10, %12 : vector<8x128xf32>
    %14 = arith.truncf %13 : vector<8x128xf32> to vector<8x128xbf16>
    %c0_11 = arith.constant 0 : index
    %c0_12 = arith.constant 0 : index
    %15 = vector.load %arg6[%c0_11, %c0_12] : memref<8x128xbf16, #tpu.memory_space<vmem>>, vector<8x128xbf16>
    tpu.vector_store %arg6[%c0_11, %c0_12], %14 {strides = array<i32>} : memref<8x128xbf16, #tpu.memory_space<vmem>>, vector<8x128xbf16>,
    return
  }
  func.func @transform_0(%arg0: i32) -> (i32, i32) {
    %c0_i32 = arith.constant 0 : i32
    %c0_i32_0 = arith.constant 0 : i32
    return %arg0, %c0_i32 : i32, i32
  }
  func.func @transform_1(%arg0: i32) -> (i32, i32) {
    %c0_i32 = arith.constant 0 : i32
    %c0_i32_0 = arith.constant 0 : i32
    %c0_i32_1 = arith.constant 0 : i32
    return %c0_i32, %c0_i32_0 : i32, i32
  }
  func.func @transform_2(%arg0: i32) -> (i32, i32) {
    %c0_i32 = arith.constant 0 : i32
    %c0_i32_0 = arith.constant 0 : i32
    %c0_i32_1 = arith.constant 0 : i32
    return %c0_i32, %c0_i32_0 : i32, i32
  }
  func.func @transform_3(%arg0: i32) -> (i32, i32) {
    %c0_i32 = arith.constant 0 : i32
    %c0_i32_0 = arith.constant 0 : i32
    %c0_i32_1 = arith.constant 0 : i32
    return %c0_i32, %c0_i32_0 : i32, i32
  }
  func.func @transform_4(%arg0: i32) -> (i32, i32) {
    %c0_i32 = arith.constant 0 : i32
    %c0_i32_0 = arith.constant 0 : i32
    %c0_i32_1 = arith.constant 0 : i32
    return %c0_i32, %c0_i32_0 : i32, i32
  }
  func.func @transform_5(%arg0: i32) -> (i32, i32) {
    %c0_i32 = arith.constant 0 : i32
    %c0_i32_0 = arith.constant 0 : i32
    return %arg0, %c0_i32 : i32, i32
  }
}

</mosaic_0001>

<llo_original>
// kernel: emissions_padded.1
$region0: #{emissions_padded.1}
  #allocation0 [shape = 'u32[]', space=smem, size = 0x4, offset = 0x4, fixed_abs, tag = 'smem constant byte address 0x4 - core index']
  #allocation1 [shape = 'u32[72,128]{1,0:T(1,128)}', space=vmem, size = 0x9000, scoped, tag = 'internal scratch']
  %s0 = inlined_call_operand.vmem [shape: bf16[16,32], index: 0, kind: input, shape index: {}]
  %s1 = inlined_call_operand.vmem [shape: bf16[32,128], index: 1, kind: input, shape index: {}]
  %s2 = inlined_call_operand.vmem [shape: f32[1,128], index: 2, kind: input, shape index: {}]
  %s3 = inlined_call_operand.hbm [shape: bf16[128,128], index: 3, kind: input, shape index: {}]
  %s4 = inlined_call_operand.vmem [shape: f32[1,128], index: 4, kind: input, shape index: {}]
  %s5 = inlined_call_operand.hbm [shape: bf16[16,128], index: 5, kind: output, shape index: {}]
  %s6 = sld [smem:[#allocation0]]
  $region57: #{emissions_padded.1} parent=0
    _
  %s8 = ssub.s32 1, %s6
  %s9 = scalar_select 0, %s8, %s6
  $region1: #{emissions_padded.1} parent=0
    #allocation2 [shape = 'u8[32768]{0}', space=vmem, size = 0x8000, scoped, tag = 'input window, operand 3, single buffered']
    #allocation3 [shape = 's32[2]{0}', space=sflag, size = 0x8, scoped, tag = 'scoped memory for emissions_padded.1']
    #allocation4 [shape = 's32[2]{0}', space=sflag, size = 0x8, scoped, tag = 'scoped memory for emissions_padded.1']
    #allocation5 [shape = 'u8[4096]{0}', space=vmem, size = 0x1000, scoped, tag = 'output window, operand 0']
    %10 = vsyncpa [#allocation3], 0
    %11 = vsyncpa [#allocation4], 0
    %s12 = scalar_lea.sflag [#allocation4], 1
    %13 = vsyncpa %s12, 0
    loop: start=0, step=1, limit=4
    $region2: #{emissions_padded.1} parent=1 // loop_pre_header
      _
    $region3: #{emissions_padded.1} parent=1 // loop_header
      %s15 = sphi 0, %s19
      %p16 = scmp.ge.s32.totalorder %s15, 4
      %s25 = sphi 0, %s27
      %s28 = sphi 0, %s25
      %s29 = sphi 0, %s28
      %s45 = sphi 0, %s29
      %s49 = sphi 0, %s49
      %s51 = sphi 0, %s49
      %s52 = sphi 0, %s51
      %s66 = sphi 0, %s52
      %s70 = sphi 0, %s70
      %s72 = sphi 0, %s70
      %s73 = sphi 0, %s72
      %s87 = sphi 0, %s73
      %s91 = sphi 0, %s91
      %s93 = sphi 0, %s91
      %s94 = sphi 0, %s93
      %s108 = sphi 0, %s94
      %s112 = sphi 0, %s112
      %s114 = sphi 0, %s112
      %s115 = sphi 0, %s114
      %s129 = sphi 0, %s115
      %s135 = sphi 0, %s137
      %s138 = sphi 0, %s135
      %s139 = sphi 0, %s138
      %s155 = sphi 0, %s139
    $region4: #{emissions_padded.1} parent=1 // loop_header_branch
      %18 = sbr.rel (%p16) target = $region8
    $region5: #{emissions_padded.1} parent=1 // loop_body
      %s20 = ssub.s32 %s15, 1
      %s21 = ssub.s32 %s15, 2
      %s22 = sadd.s32 %s15, 1
      %s23 = ssub.s32 %s15, %s22
      %p24 = scmp.eq.s32.totalorder %s23, 0
      %s26 = sadd.s32 %s25, 1
      %s27 = scalar_select %p24, %s25, %s26
      %p30 = pneg %p24
      %p31 = scmp.eq.s32.totalorder %s15, 1
      %p32 = por %p30, %p31
      %p33 = scmp.ne.s32.totalorder %s25, %s28
      %p34 = scmp.eq.s32.totalorder %s15, 0
      %p35 = por %p33, %p34
      %p36 = scmp.ne.s32.totalorder %s25, %s28
      %p37 = scmp.eq.s32.totalorder %s20, 1
      %p38 = por %p36, %p37
      %p39 = scmp.ne.s32.totalorder %s28, %s29
      %p40 = scmp.eq.s32.totalorder %s20, 0
      %p41 = por %p39, %p40
      %p42 = scmp.ne.s32.totalorder %s28, %s29
      %p43 = scmp.eq.s32.totalorder %s21, 1
      %p44 = por %p42, %p43
      %p46 = scmp.ne.s32.totalorder %s29, %s45
      %p47 = scmp.eq.s32.totalorder %s21, 0
      %p48 = por %p46, %p47
      %s50 = sadd.s32 %s49, 1
      %p53 = scmp.eq.s32.totalorder %s15, 1
      %p54 = scmp.ne.s32.totalorder %s49, %s51
      %p55 = scmp.eq.s32.totalorder %s15, 0
      %p56 = por %p54, %p55
      %p57 = scmp.ne.s32.totalorder %s49, %s51
      %p58 = scmp.eq.s32.totalorder %s20, 1
      %p59 = por %p57, %p58
      %p60 = scmp.ne.s32.totalorder %s51, %s52
      %p61 = scmp.eq.s32.totalorder %s20, 0
      %p62 = por %p60, %p61
      %p63 = scmp.ne.s32.totalorder %s51, %s52
      %p64 = scmp.eq.s32.totalorder %s21, 1
      %p65 = por %p63, %p64
      %p67 = scmp.ne.s32.totalorder %s52, %s66
      %p68 = scmp.eq.s32.totalorder %s21, 0
      %p69 = por %p67, %p68
      %s71 = sadd.s32 %s70, 1
      %p74 = scmp.eq.s32.totalorder %s15, 1
      %p75 = scmp.ne.s32.totalorder %s70, %s72
      %p76 = scmp.eq.s32.totalorder %s15, 0
      %p77 = por %p75, %p76
      %p78 = scmp.ne.s32.totalorder %s70, %s72
      %p79 = scmp.eq.s32.totalorder %s20, 1
      %p80 = por %p78, %p79
      %p81 = scmp.ne.s32.totalorder %s72, %s73
      %p82 = scmp.eq.s32.totalorder %s20, 0
      %p83 = por %p81, %p82
      %p84 = scmp.ne.s32.totalorder %s72, %s73
      %p85 = scmp.eq.s32.totalorder %s21, 1
      %p86 = por %p84, %p85
      %p88 = scmp.ne.s32.totalorder %s73, %s87
      %p89 = scmp.eq.s32.totalorder %s21, 0
      %p90 = por %p88, %p89
      %s92 = sadd.s32 %s91, 1
      %p95 = scmp.eq.s32.totalorder %s15, 1
      %p96 = scmp.ne.s32.totalorder %s91, %s93
      %p97 = scmp.eq.s32.totalorder %s15, 0
      %p98 = por %p96, %p97
      %p99 = scmp.ne.s32.totalorder %s91, %s93
      %p100 = scmp.eq.s32.totalorder %s20, 1
      %p101 = por %p99, %p100
      %p102 = scmp.ne.s32.totalorder %s93, %s94
      %p103 = scmp.eq.s32.totalorder %s20, 0
      %p104 = por %p102, %p103
      %p105 = scmp.ne.s32.totalorder %s93, %s94
      %p106 = scmp.eq.s32.totalorder %s21, 1
      %p107 = por %p105, %p106
      %p109 = scmp.ne.s32.totalorder %s94, %s108
      %p110 = scmp.eq.s32.totalorder %s21, 0
      %p111 = por %p109, %p110
      %s113 = sadd.s32 %s112, 1
      %p116 = scmp.eq.s32.totalorder %s15, 1
      %p117 = scmp.ne.s32.totalorder %s112, %s114
      %p118 = scmp.eq.s32.totalorder %s15, 0
      %p119 = por %p117, %p118
      %p120 = scmp.ne.s32.totalorder %s112, %s114
      %p121 = scmp.eq.s32.totalorder %s20, 1
      %p122 = por %p120, %p121
      %p123 = scmp.ne.s32.totalorder %s114, %s115
      %p124 = scmp.eq.s32.totalorder %s20, 0
      %p125 = por %p123, %p124
      %p126 = scmp.ne.s32.totalorder %s114, %s115
      %p127 = scmp.eq.s32.totalorder %s21, 1
      %p128 = por %p126, %p127
      %p130 = scmp.ne.s32.totalorder %s115, %s129
      %p131 = scmp.eq.s32.totalorder %s21, 0
      %p132 = por %p130, %p131
      %s133 = ssub.s32 %s15, %s22
      %p134 = scmp.eq.s32.totalorder %s133, 0
      %s136 = sadd.s32 %s135, 1
      %s137 = scalar_select %p134, %s135, %s136
      %p140 = pneg %p134
      %p141 = scmp.eq.s32.totalorder %s15, 1
      %p142 = por %p140, %p141
      %p143 = scmp.ne.s32.totalorder %s135, %s138
      %p144 = scmp.eq.s32.totalorder %s15, 0
      %p145 = por %p143, %p144
      %p146 = scmp.ne.s32.totalorder %s135, %s138
      %p147 = scmp.eq.s32.totalorder %s20, 1
      %p148 = por %p146, %p147
      %p149 = scmp.ne.s32.totalorder %s138, %s139
      %p150 = scmp.eq.s32.totalorder %s20, 0
      %p151 = por %p149, %p150
      %p152 = scmp.ne.s32.totalorder %s138, %s139
      %p153 = scmp.eq.s32.totalorder %s21, 1
      %p154 = por %p152, %p153
      %p156 = scmp.ne.s32.totalorder %s139, %s155
      %p157 = scmp.eq.s32.totalorder %s21, 0
      %p158 = por %p156, %p157
      %p159 = scmp.le.s32.totalorder 1, %s15
      %p160 = scmp.lt.s32.totalorder %s15, 3
      %p161 = pnand %p159, %p160
      %p162 = pneg %p161
      // Predicated region
      $region9: #{emissions_padded.1} parent=5 // pred_check
        _
      $region10: #{emissions_padded.1} parent=5 // pred_check_branch
        %164 = sbr.rel (%p161) target = $region12
      $region11: #{emissions_padded.1} parent=5 // pred_region
        %s165 = ssub.s32 %s15, 1
        // Predicated region
        $region13: #{emissions_padded.1} parent=11 // pred_check
          %p166 = pneg %p62
        $region14: #{emissions_padded.1} parent=11 // pred_check_branch
          %168 = sbr.rel (%p166) target = $region16
        $region15: #{emissions_padded.1} parent=11 // pred_region
          _
        $region16: #{emissions_padded.1} parent=11 // pred_fallthru
          _
        // Predicated region
        $region17: #{emissions_padded.1} parent=11 // pred_check
          %p169 = pneg %p83
        $region18: #{emissions_padded.1} parent=11 // pred_check_branch
          %171 = sbr.rel (%p169) target = $region20
        $region19: #{emissions_padded.1} parent=11 // pred_region
          _
        $region20: #{emissions_padded.1} parent=11 // pred_fallthru
          _
        // Predicated region
        $region21: #{emissions_padded.1} parent=11 // pred_check
          %p172 = pneg %p104
        $region22: #{emissions_padded.1} parent=11 // pred_check_branch
          %174 = sbr.rel (%p172) target = $region24
        $region23: #{emissions_padded.1} parent=11 // pred_region
          %176 = vsyncadd [#allocation3], 0
          %s177 = sshll.u32 %s3, 4
          %s178 = int_to_ptr.hbm [resolvable:$true] %s177
          %s179 = sshll.u32 [#allocation2], 4
          %s180 = int_to_ptr.vmem [resolvable:$true] %s179
          %185 = dma.hbm_to_vmem [thread:$0]  %s178, 1024, %s180, [#allocation3], 64, 64, 4
        $region24: #{emissions_padded.1} parent=11 // pred_fallthru
          _
        // Predicated region
        $region25: #{emissions_padded.1} parent=11 // pred_check
          %p186 = pneg %p125
        $region26: #{emissions_padded.1} parent=11 // pred_check_branch
          %188 = sbr.rel (%p186) target = $region28
        $region27: #{emissions_padded.1} parent=11 // pred_region
          _
        $region28: #{emissions_padded.1} parent=11 // pred_fallthru
          _
      $region12: #{emissions_padded.1} parent=5 // pred_fallthru
        _
      %p189 = scmp.lt.s32.totalorder %s15, 2
      // Predicated region
      $region29: #{emissions_padded.1} parent=5 // pred_check
        %p190 = pneg %p189
      $region30: #{emissions_padded.1} parent=5 // pred_check_branch
        %192 = sbr.rel (%p190) target = $region32
      $region31: #{emissions_padded.1} parent=5 // pred_region
        // Predicated region
        $region33: #{emissions_padded.1} parent=31 // pred_check
          %p193 = pneg %p35
        $region34: #{emissions_padded.1} parent=31 // pred_check_branch
          %195 = sbr.rel (%p193) target = $region36
        $region35: #{emissions_padded.1} parent=31 // pred_region
          %p196 = scmp.lt.s32.totalorder %s15, 1
          %s197 = scalar_select %p196, %s15, 1
          %s198 = smul.addr %s197, 4
          %s199 = scalar_lea.vmem %s0, %s198
        $region36: #{emissions_padded.1} parent=31 // pred_fallthru
          _
      $region32: #{emissions_padded.1} parent=5 // pred_fallthru
        _
      %p200 = scmp.le.s32.totalorder 1, %s15
      %p201 = scmp.lt.s32.totalorder %s15, 3
      %p202 = pnand %p200, %p201
      %p203 = pneg %p202
      // Predicated region
      $region37: #{emissions_padded.1} parent=5 // pred_check
        _
      $region38: #{emissions_padded.1} parent=5 // pred_check_branch
        %205 = sbr.rel (%p202) target = $region40
      $region39: #{emissions_padded.1} parent=5 // pred_region
        %s206 = ssub.s32 %s15, 1
        // Predicated region
        $region41: #{emissions_padded.1} parent=39 // pred_check
          %p207 = pneg %p104
        $region42: #{emissions_padded.1} parent=39 // pred_check_branch
          %209 = sbr.rel (%p207) target = $region44
        $region43: #{emissions_padded.1} parent=39 // pred_region
          %211 = dma.done [#allocation3], 1024
        $region44: #{emissions_padded.1} parent=39 // pred_fallthru
          _
        %p212 = scmp.lt.s32.totalorder %s20, 1
        %s213 = scalar_select %p212, %s20, 1
        %s214 = smul.addr %s213, 4
        %s215 = scalar_lea.vmem %s0, %s214
        %p216 = pneg %p41
        %p217 = pneg %p38
        %p218 = pneg %p62
        %p219 = pneg %p59
        %p220 = pneg %p83
        %p221 = pneg %p80
        %p222 = pneg %p104
        %p223 = pneg %p101
        %p224 = pneg %p125
        %p225 = pneg %p122
        %p226 = pneg %p151
        %p227 = pneg %p148
        %s228 = sand.u32 %s138, 1
        %s229 = scalar_lea.sflag [#allocation4], %s228
        %s230 = sand.u32 %s138, 1
        %s231 = smul.addr %s230, 4
        %s232 = scalar_lea.vmem [#allocation5], %s231
        %p233 = scmp.lt.s32.totalorder %s20, 1
        %s234 = scalar_select %p233, %s20, 1
        %s235 = smul.addr %s234, 4
        %s236 = scalar_lea.vmem %s0, %s235
        %v238 = vld [vmem:[%s236] sm:$0xf]
        %v239 = vld [vmem:[%s1] sm:$0xf]
        %v240 = vld [vmem:[%s1 + $0x4] sm:$0xf]
        %v241 = vld [vmem:[%s1 + $0x8] sm:$0xf]
        %v242 = vld [vmem:[%s1 + $0xc] sm:$0xf]
        %v243 = vld [vmem:[%s2] sm:$0x1]
        %v245 = vperm.slane %v243, 0
        %v251 = vunpack.c.l.b16 %v239
        %v252 = vunpack.c.l.b16 %v240
        %v253 = vunpack.c.l.b16 %v241
        %v254 = vunpack.c.l.b16 %v242
        %v255 = vpack.c.b16 %v252, %v251
        %v256 = vpack.c.b16 %v254, %v253
        %vm259 = vcmask 261120
        %v261 = vsel %vm259, %v238, 0
        %263 = vmatpush.bf16.msra.mxu0 0
        %264 = vmatpush.bf16.msra.mxu0 0
        %265 = vmatpush.bf16.msra.mxu0 0
        %266 = vmatpush.bf16.msra.mxu0 0
        %267 = vmatpush.bf16.msra.mxu0 0
        %268 = vmatpush.bf16.msra.mxu0 0
        %269 = vmatpush.bf16.msra.mxu0 %v256
        %270 = vmatpush.bf16.msra.mxu0 %v255
        %271 = vmatmul.bf16.gmra.mxu0 %v261
        %v272 = vpop.f32.mrf.mxu0
        %v273 = vadd.f32 %v245, %v272
        %v274 = vpop.f32.mrf.mxu0
        %275 = vdwg.mxu0
        %v276 = vmax.f32 %v273, 0.0
        %v277 = vpack.c.bf16 %v276, %v276
        %v278 = vld [vmem:[#allocation2] sm:$0xf]
        %v279 = vld [vmem:[#allocation2 + $0x4] sm:$0xf]
        %v280 = vld [vmem:[#allocation2 + $0x8] sm:$0xf]
        %v281 = vld [vmem:[#allocation2 + $0xc] sm:$0xf]
        %v282 = vld [vmem:[#allocation2 + $0x10] sm:$0xf]
        %v283 = vld [vmem:[#allocation2 + $0x14] sm:$0xf]
        %v284 = vld [vmem:[#allocation2 + $0x18] sm:$0xf]
        %v285 = vld [vmem:[#allocation2 + $0x1c] sm:$0xf]
        %v286 = vld [vmem:[#allocation2 + $0x20] sm:$0xf]
        %v287 = vld [vmem:[#allocation2 + $0x24] sm:$0xf]
        %v288 = vld [vmem:[#allocation2 + $0x28] sm:$0xf]
        %v289 = vld [vmem:[#allocation2 + $0x2c] sm:$0xf]
        %v290 = vld [vmem:[#allocation2 + $0x30] sm:$0xf]
        %v291 = vld [vmem:[#allocation2 + $0x34] sm:$0xf]
        %v292 = vld [vmem:[#allocation2 + $0x38] sm:$0xf]
        %v293 = vld [vmem:[#allocation2 + $0x3c] sm:$0xf]
        %v294 = vld [vmem:[%s4] sm:$0x1]
        %v296 = vperm.slane %v294, 0
        %v314 = vunpack.c.l.b16 %v278
        %v315 = vunpack.c.l.b16 %v279
        %v316 = vunpack.c.l.b16 %v280
        %v317 = vunpack.c.l.b16 %v281
        %v318 = vunpack.c.l.b16 %v282
        %v319 = vunpack.c.l.b16 %v283
        %v320 = vunpack.c.l.b16 %v284
        %v321 = vunpack.c.l.b16 %v285
        %v322 = vunpack.c.l.b16 %v286
        %v323 = vunpack.c.l.b16 %v287
        %v324 = vunpack.c.l.b16 %v288
        %v325 = vunpack.c.l.b16 %v289
        %v326 = vunpack.c.l.b16 %v290
        %v327 = vunpack.c.l.b16 %v291
        %v328 = vunpack.c.l.b16 %v292
        %v329 = vunpack.c.l.b16 %v293
        %v330 = vpack.c.b16 %v315, %v314
        %v331 = vpack.c.b16 %v317, %v316
        %v332 = vpack.c.b16 %v319, %v318
        %v333 = vpack.c.b16 %v321, %v320
        %v334 = vpack.c.b16 %v323, %v322
        %v335 = vpack.c.b16 %v325, %v324
        %v336 = vpack.c.b16 %v327, %v326
        %v337 = vpack.c.b16 %v329, %v328
        %346 = vmatpush.bf16.msra.mxu0 %v337
        %347 = vmatpush.bf16.msra.mxu0 %v336
        %348 = vmatpush.bf16.msra.mxu0 %v335
        %349 = vmatpush.bf16.msra.mxu0 %v334
        %350 = vmatpush.bf16.msra.mxu0 %v333
        %351 = vmatpush.bf16.msra.mxu0 %v332
        %352 = vmatpush.bf16.msra.mxu0 %v331
        %353 = vmatpush.bf16.msra.mxu0 %v330
        %354 = vmatmul.bf16.gmra.mxu0 %v277
        %v355 = vpop.f32.mrf.mxu0
        %v356 = vadd.f32 %v296, %v355
        %v357 = vpop.f32.mrf.mxu0
        %358 = vdwg.mxu0
        %v359 = vpack.c.bf16 %v356, %v356
        %360 = vst [vmem:[%s232] sm:$0xf] %v359
        %s361 = sand.u32 %s138, 1
        %s362 = scalar_lea.sflag [#allocation4], %s361
        %s363 = sand.u32 %s138, 1
        %s364 = smul.addr %s363, 4
        %s365 = scalar_lea.vmem [#allocation5], %s364
        // Predicated region
        $region45: #{emissions_padded.1} parent=39 // pred_check
          %p366 = pneg %p148
        $region46: #{emissions_padded.1} parent=39 // pred_check_branch
          %368 = sbr.rel (%p366) target = $region48
        $region47: #{emissions_padded.1} parent=39 // pred_region
          %370 = vsyncadd %s362, 0
          %s371 = smul.addr %s20, 4
          %s372 = scalar_lea.hbm %s5, %s371
          %s374 = sshll.u32 %s365, 4
          %s375 = int_to_ptr.vmem [resolvable:$true] %s374
          %s376 = sshll.u32 %s372, 4
          %s377 = int_to_ptr.hbm [resolvable:$true] %s376
          %379 = dma.vmem_to_hbm [thread:$0]  %s375, 64, %s377, %s362
        $region48: #{emissions_padded.1} parent=39 // pred_fallthru
          _
      $region40: #{emissions_padded.1} parent=5 // pred_fallthru
        _
      %p380 = scmp.le.s32.totalorder 2, %s15
      // Predicated region
      $region49: #{emissions_padded.1} parent=5 // pred_check
        %p381 = pneg %p380
      $region50: #{emissions_padded.1} parent=5 // pred_check_branch
        %383 = sbr.rel (%p381) target = $region52
      $region51: #{emissions_padded.1} parent=5 // pred_region
        %s384 = ssub.s32 %s15, 2
        // Predicated region
        $region53: #{emissions_padded.1} parent=51 // pred_check
          %p385 = pneg %p154
        $region54: #{emissions_padded.1} parent=51 // pred_check_branch
          %387 = sbr.rel (%p385) target = $region56
        $region55: #{emissions_padded.1} parent=51 // pred_region
          %s388 = sand.u32 %s139, 1
          %s389 = scalar_lea.sflag [#allocation4], %s388
          %s390 = sand.u32 %s139, 1
          %s391 = smul.addr %s390, 4
          %s392 = scalar_lea.vmem [#allocation5], %s391
          %394 = dma.done %s389, 64
        $region56: #{emissions_padded.1} parent=51 // pred_fallthru
          _
      $region52: #{emissions_padded.1} parent=5 // pred_fallthru
        _
    $region6: #{emissions_padded.1} parent=1 // loop_footer
      %s19 = sadd.s32 1, %s15
    $region7: #{emissions_padded.1} parent=1 // loop_footer_branch
      %14 = sbr.rel target = $region3
    $region8: #{emissions_padded.1} parent=1 // loop_exit
      _
    %395 = vsyncpa [#allocation3], 1
    %s396 = scalar_lea.sflag [#allocation3], 1
    %397 = vsyncpa %s396, 1
    %398 = vsyncpa [#allocation4], 1
    %s399 = scalar_lea.sflag [#allocation4], 1
    %400 = vsyncpa %s399, 1

</llo_original>
